<compile_context>
chip_gen: v7x
topology: tpu7x:2x2x1
jax: 0.10.0
libtpu: 0.0.40
codegen_flags: <defaults>
</compile_context>

<pallas_src>
import jax
import jax.numpy as jnp
from jax.experimental import pallas as pl
from jax.experimental.pallas import tpu as pltpu

_NEG = -1e30  # padding value for invalid class columns / running-max init (assumes real
              # logits are finite and > -1e30)


def _round_up(x, m):
    return -(-x // m) * m


def _pick_batch_tile(batch):
    """Rows per block: multiple of 8, <= 256, and >= 2 blocks when batch allows (v7x)."""
    b8 = _round_up(max(int(batch), 1), 8)
    if b8 <= 8:
        return 8
    return min(256, _round_up((b8 + 1) // 2, 8))


def _pick_class_tile(counts, rows, nb):
    """Class tile TC: trade per-head padding bytes against grid-step overhead."""
    best_tc, best_cost = 128, float("inf")
    for tc in (128, 256, 512, 1024, 2048):
        cols = sum(_round_up(c, tc) for c in counts)
        steps = nb * (cols // tc)
        cost = (rows * cols * 4) / 1.3e12 + steps * 0.4e-6
        if cost < best_cost:
            best_cost, best_tc = cost, tc
    return best_tc


def _lse_kernel(first_ref, last_ref,        # SMEM (nt,) int32 scalar-prefetch flags
                logits_ref,                 # VMEM (TB, TC) logits (current class tile)
                out_ref,                    # VMEM (TB, 128) per-row head-summed LSE
                m_sc, l_sc, acc_sc):        # VMEM (TB, 128) f32 scratch
    t = pl.program_id(1)
    nt = pl.num_programs(1)
    n_chunks = logits_ref.shape[-1] // 128

    @pl.when(t == 0)
    def _reset_batch_tile():
        acc_sc[...] = jnp.zeros_like(acc_sc)

    @pl.when(first_ref[t] == 1)
    def _reset_head():
        m_sc[...] = jnp.full_like(m_sc, _NEG)
        l_sc[...] = jnp.zeros_like(l_sc)

    def chunk(j):  # lane-aligned 128-wide slab of the tile (one vld, VPU-friendly)
        return logits_ref[:, j * 128:(j + 1) * 128].astype(jnp.float32)

    # ---- lane-local online LSE update over this tile (VPU/EUP only, no XLU) ----
    m_prev = m_sc[...]
    tile_max = chunk(0)
    for j in range(1, n_chunks):
        tile_max = jnp.maximum(tile_max, chunk(j))
    m_new = jnp.maximum(m_prev, tile_max)

    s = jnp.exp(chunk(0) - m_new)
    for j in range(1, n_chunks):
        s = s + jnp.exp(chunk(j) - m_new)
    l_sc[...] = l_sc[...] * jnp.exp(m_prev - m_new) + s
    m_sc[...] = m_new

    # ---- per-head finalize: the only cross-lane (XLU) reductions, once per head ----
    @pl.when(last_ref[t] == 1)
    def _finalize_head():
        m_lane = m_sc[...]
        m_row = jnp.max(m_lane, axis=-1, keepdims=True)                        # (TB, 1)
        l_row = jnp.sum(l_sc[...] * jnp.exp(m_lane - m_row),
                        axis=-1, keepdims=True)                                # (TB, 1)
        # Lanes that never saw a valid column have m_lane == -1e30, so their
        # l_lane * exp(m_lane - m_row) contribution is exactly 0.
        acc_sc[...] = acc_sc[...] + (m_row + jnp.log(l_row))                   # lane bcast

    @pl.when(t == nt - 1)
    def _store():
        out_ref[...] = acc_sc[...]


def _multi_head_lse_rowsum(out_list, counts):
    """Per-row sum over heads of log-sum-exp(logits_h[row]).  Returns (B,) f32."""
    B = int(out_list[0].shape[0])
    dtype = jnp.result_type(*[o.dtype for o in out_list])

    tb = _pick_batch_tile(B)
    b_pad = _round_up(B, tb)
    nb = b_pad // tb
    tc = _pick_class_tile(counts, b_pad, nb)

    # Per-head pad (with -1e30) only up to a multiple of TC, then concat along classes.
    padded, firsts, lasts = [], [], []
    for c, o in zip(counts, out_list):
        cp = _round_up(c, tc)
        padded.append(jnp.pad(o.astype(dtype), ((0, 0), (0, cp - c)),
                              constant_values=_NEG))
        n_tiles_h = cp // tc
        firsts += [1] + [0] * (n_tiles_h - 1)
        lasts += [0] * (n_tiles_h - 1) + [1]
    logits_cat = jnp.concatenate(padded, axis=1)                    # (B, C_cat)
    if b_pad > B:                                                   # extra rows are junk,
        logits_cat = jnp.pad(logits_cat, ((0, b_pad - B), (0, 0)))  # sliced off below
    nt = len(firsts)
    first_flags = jnp.asarray(firsts, dtype=jnp.int32)
    last_flags = jnp.asarray(lasts, dtype=jnp.int32)

    grid_spec = pltpu.PrefetchScalarGridSpec(
        num_scalar_prefetch=2,
        grid=(nb, nt),
        in_specs=[pl.BlockSpec((tb, tc), lambda b, t, ff, lf: (b, t))],
        out_specs=pl.BlockSpec((tb, 128), lambda b, t, ff, lf: (b, 0)),
        scratch_shapes=[pltpu.VMEM((tb, 128), jnp.float32),   # running max (lane-local)
                        pltpu.VMEM((tb, 128), jnp.float32),   # running sum (lane-local)
                        pltpu.VMEM((tb, 128), jnp.float32)],  # per-row LSE accumulator
    )
    out = pl.pallas_call(
        _lse_kernel,
        out_shape=jax.ShapeDtypeStruct((b_pad, 128), jnp.float32),
        grid_spec=grid_spec,
        compiler_params=pltpu.CompilerParams(
            dimension_semantics=("parallel", "arbitrary"),
            vmem_limit_bytes=48 * 1024 * 1024),
    )(first_flags, last_flags, logits_cat)
    return out[:B, 0]


class FinetuneLossPallas:
    """JAX/Pallas equivalent of the PyTorch FinetuneLoss module."""

    def __init__(self, layer_count_list):
        self.layer_count_list = list(layer_count_list)

    def __call__(self, out_list, poi_label):
        num_heads = len(self.layer_count_list)
        assert len(out_list) == num_heads
        batch = int(out_list[0].shape[0])
        counts = [int(o.shape[1]) for o in out_list]
        assert all(c >= 1 for c in counts), "every head needs >= 1 class"

        labels = jnp.asarray(poi_label).astype(jnp.int32).reshape(batch, num_heads)

        # Hoisted label pick: B*H gathers in plain JAX, kept out of the hot class loop.
        picked = jnp.zeros((batch,), jnp.float32)
        for h, o in enumerate(out_list):
            g = jnp.take_along_axis(o.astype(jnp.float32), labels[:, h:h + 1], axis=1)
            picked = picked + g[:, 0]

        lse_rows = _multi_head_lse_rowsum(out_list, counts)         # (B,) sum over heads
        total = jnp.sum(lse_rows) - jnp.sum(picked)
        # mean over batch per head, summed over heads, divided by #heads
        return total / (batch * num_heads)


if __name__ == "__main__":
    key = jax.random.PRNGKey(0)

    def run_case(layer_count_list, batch, case_key):
        keys = jax.random.split(case_key, 2 * len(layer_count_list))
        out_list, label_cols = [], []
        for i, c in enumerate(layer_count_list):
            logits = jax.random.normal(keys[2 * i], (batch, c), dtype=jnp.float32)
            labels = jax.random.randint(keys[2 * i + 1], (batch,), 0, c, dtype=jnp.int32)
            out_list.append(logits)
            label_cols.append(labels)
        poi_label = jnp.stack(label_cols, axis=1)                   # (B, H) int32

        loss = FinetuneLossPallas(layer_count_list)(out_list, poi_label)
        loss = jax.block_until_ready(loss)

        # Pure-JAX reference (matches torch: mean CE per head, averaged over heads).
        ref = 0.0
        for i, logits in enumerate(out_list):
            logp = jax.nn.log_softmax(logits, axis=-1)
            ref += -jnp.mean(jnp.take_along_axis(logp, poi_label[:, i:i + 1], axis=-1))
        ref = ref / len(layer_count_list)
        assert jnp.allclose(loss, ref, atol=2e-4, rtol=2e-4), (loss, ref)
        return loss

    k1, k2 = jax.random.split(key)
    run_case([8, 12, 16], 8, k1)    # tiny heads, single batch tile, TC=128
    run_case([300, 7], 12, k2)      # multi-chunk tiles, 2 batch tiles, padded batch rows
    print("KERNEL_OK")
</pallas_src>

<mosaic_0001>
module attributes {stable_mosaic.version = 11 : i64} {
  func.func @_lse_kernel(%arg0: i32, %arg1: i32, %arg2: memref<3xi32, #tpu.memory_space<smem>>, %arg3: memref<3xi32, #tpu.memory_space<smem>>, %arg4: memref<8x128xf32, #tpu.memory_space<vmem>>, %arg5: memref<8x128xf32, #tpu.memory_space<vmem>>, %arg6: memref<8x128xf32, #tpu.memory_space<vmem>>, %arg7: memref<8x128xf32, #tpu.memory_space<vmem>>, %arg8: memref<8x128xf32, #tpu.memory_space<vmem>>) attributes {dimension_semantics = [#tpu.dimension_semantics<parallel>, #tpu.dimension_semantics<arbitrary>], iteration_bounds = array<i64: 1, 3>, scalar_prefetch = 2 : i64, scratch_operands = 3 : i64, tpu.core_type = #tpu.core_type<tc>, window_params = [{transform_indices = @transform_0, window_bounds = array<i64: 8, 128>}, {transform_indices = @transform_1, window_bounds = array<i64: 8, 128>}]} {
    %c0_i32 = arith.constant 0 : i32
    %0 = arith.cmpi eq, %arg1, %c0_i32 : i32
    %1 = arith.extui %0 : i1 to i32
    %c0_i32_0 = arith.constant 0 : i32
    %2 = arith.cmpi ne, %1, %c0_i32_0 : i32
    scf.if %2 {
      %cst = arith.constant 0.000000e+00 : f32
      %29 = vector.broadcast %cst : f32 to vector<8x128xf32>
      %c0_16 = arith.constant 0 : index
      %c0_17 = arith.constant 0 : index
      %30 = vector.load %arg8[%c0_16, %c0_17] : memref<8x128xf32, #tpu.memory_space<vmem>>, vector<8x128xf32>
      tpu.vector_store %arg8[%c0_16, %c0_17], %29 {strides = array<i32>} : memref<8x128xf32, #tpu.memory_space<vmem>>, vector<8x128xf32>,
    } else {
    }
    %3 = arith.index_cast %arg1 : i32 to index
    %4 = memref.load %arg2[%3] : memref<3xi32, #tpu.memory_space<smem>>
    %c1_i32 = arith.constant 1 : i32
    %5 = arith.cmpi eq, %4, %c1_i32 : i32
    %6 = arith.extui %5 : i1 to i32
    %c0_i32_1 = arith.constant 0 : i32
    %7 = arith.cmpi ne, %6, %c0_i32_1 : i32
    scf.if %7 {
      %cst = arith.constant -1.000000e+30 : f32
      %29 = vector.broadcast %cst : f32 to vector<8x128xf32>
      %c0_16 = arith.constant 0 : index
      %c0_17 = arith.constant 0 : index
      %30 = vector.load %arg6[%c0_16, %c0_17] : memref<8x128xf32, #tpu.memory_space<vmem>>, vector<8x128xf32>
      tpu.vector_store %arg6[%c0_16, %c0_17], %29 {strides = array<i32>} : memref<8x128xf32, #tpu.memory_space<vmem>>, vector<8x128xf32>,
      %cst_18 = arith.constant 0.000000e+00 : f32
      %31 = vector.broadcast %cst_18 : f32 to vector<8x128xf32>
      %c0_19 = arith.constant 0 : index
      %c0_20 = arith.constant 0 : index
      %32 = vector.load %arg7[%c0_19, %c0_20] : memref<8x128xf32, #tpu.memory_space<vmem>>, vector<8x128xf32>
      tpu.vector_store %arg7[%c0_19, %c0_20], %31 {strides = array<i32>} : memref<8x128xf32, #tpu.memory_space<vmem>>, vector<8x128xf32>,
    } else {
    }
    %c0 = arith.constant 0 : index
    %c0_2 = arith.constant 0 : index
    %8 = vector.load %arg6[%c0, %c0_2] : memref<8x128xf32, #tpu.memory_space<vmem>>, vector<8x128xf32>
    %c0_3 = arith.constant 0 : index
    %c0_4 = arith.constant 0 : index
    %9 = vector.load %arg4[%c0_3, %c0_4] : memref<8x128xf32, #tpu.memory_space<vmem>>, vector<8x128xf32>
    %10 = arith.maximumf %8, %9 : vector<8x128xf32>
    %c0_5 = arith.constant 0 : index
    %c0_6 = arith.constant 0 : index
    %11 = vector.load %arg4[%c0_5, %c0_6] : memref<8x128xf32, #tpu.memory_space<vmem>>, vector<8x128xf32>
    %12 = arith.subf %11, %10 : vector<8x128xf32>
    %13 = math.exp %12 : vector<8x128xf32>
    %c0_7 = arith.constant 0 : index
    %c0_8 = arith.constant 0 : index
    %14 = vector.load %arg7[%c0_7, %c0_8] : memref<8x128xf32, #tpu.memory_space<vmem>>, vector<8x128xf32>
    %15 = arith.subf %8, %10 : vector<8x128xf32>
    %16 = math.exp %15 : vector<8x128xf32>
    %17 = arith.mulf %14, %16 : vector<8x128xf32>
    %18 = arith.addf %17, %13 : vector<8x128xf32>
    %c0_9 = arith.constant 0 : index
    %c0_10 = arith.constant 0 : index
    %19 = vector.load %arg7[%c0_9, %c0_10] : memref<8x128xf32, #tpu.memory_space<vmem>>, vector<8x128xf32>
    tpu.vector_store %arg7[%c0_9, %c0_10], %18 {strides = array<i32>} : memref<8x128xf32, #tpu.memory_space<vmem>>, vector<8x128xf32>,
    %c0_11 = arith.constant 0 : index
    %c0_12 = arith.constant 0 : index
    %20 = vector.load %arg6[%c0_11, %c0_12] : memref<8x128xf32, #tpu.memory_space<vmem>>, vector<8x128xf32>
    tpu.vector_store %arg6[%c0_11, %c0_12], %10 {strides = array<i32>} : memref<8x128xf32, #tpu.memory_space<vmem>>, vector<8x128xf32>,
    %21 = arith.index_cast %arg1 : i32 to index
    %22 = memref.load %arg3[%21] : memref<3xi32, #tpu.memory_space<smem>>
    %c1_i32_13 = arith.constant 1 : i32
    %23 = arith.cmpi eq, %22, %c1_i32_13 : i32
    %24 = arith.extui %23 : i1 to i32
    %c0_i32_14 = arith.constant 0 : i32
    %25 = arith.cmpi ne, %24, %c0_i32_14 : i32
    scf.if %25 {
      %c0_16 = arith.constant 0 : index
      %c0_17 = arith.constant 0 : index
      %29 = vector.load %arg6[%c0_16, %c0_17] : memref<8x128xf32, #tpu.memory_space<vmem>>, vector<8x128xf32>
      %cst = arith.constant dense<0xFF800000> : vector<8xf32>
      %30 = vector.multi_reduction <maximumf>, %29, %cst [1] : vector<8x128xf32> to vector<8xf32>
      %31 = vector.shape_cast %30 : vector<8xf32> to vector<8x1xf32>
      %c0_18 = arith.constant 0 : index
      %c0_19 = arith.constant 0 : index
      %32 = vector.load %arg7[%c0_18, %c0_19] : memref<8x128xf32, #tpu.memory_space<vmem>>, vector<8x128xf32>
      %33 = vector.broadcast %31 : vector<8x1xf32> to vector<8x128xf32>
      %34 = arith.subf %29, %33 : vector<8x128xf32>
      %35 = math.exp %34 : vector<8x128xf32>
      %36 = arith.mulf %32, %35 : vector<8x128xf32>
      %cst_20 = arith.constant dense<0.000000e+00> : vector<8xf32>
      %37 = vector.multi_reduction <add>, %36, %cst_20 [1] : vector<8x128xf32> to vector<8xf32>
      %38 = vector.shape_cast %37 : vector<8xf32> to vector<8x1xf32>
      %c0_21 = arith.constant 0 : index
      %c0_22 = arith.constant 0 : index
      %39 = vector.load %arg8[%c0_21, %c0_22] : memref<8x128xf32, #tpu.memory_space<vmem>>, vector<8x128xf32>
      %40 = math.log %38 : vector<8x1xf32>
      %41 = arith.addf %31, %40 : vector<8x1xf32>
      %42 = vector.broadcast %41 : vector<8x1xf32> to vector<8x128xf32>
      %43 = arith.addf %39, %42 : vector<8x128xf32>
      %c0_23 = arith.constant 0 : index
      %c0_24 = arith.constant 0 : index
      %44 = vector.load %arg8[%c0_23, %c0_24] : memref<8x128xf32, #tpu.memory_space<vmem>>, vector<8x128xf32>
      tpu.vector_store %arg8[%c0_23, %c0_24], %43 {strides = array<i32>} : memref<8x128xf32, #tpu.memory_space<vmem>>, vector<8x128xf32>,
    } else {
    }
    %c2_i32 = arith.constant 2 : i32
    %26 = arith.cmpi eq, %arg1, %c2_i32 : i32
    %27 = arith.extui %26 : i1 to i32
    %c0_i32_15 = arith.constant 0 : i32
    %28 = arith.cmpi ne, %27, %c0_i32_15 : i32
    scf.if %28 {
      %c0_16 = arith.constant 0 : index
      %c0_17 = arith.constant 0 : index
      %29 = vector.load %arg8[%c0_16, %c0_17] : memref<8x128xf32, #tpu.memory_space<vmem>>, vector<8x128xf32>
      %c0_18 = arith.constant 0 : index
      %c0_19 = arith.constant 0 : index
      %30 = vector.load %arg5[%c0_18, %c0_19] : memref<8x128xf32, #tpu.memory_space<vmem>>, vector<8x128xf32>
      tpu.vector_store %arg5[%c0_18, %c0_19], %29 {strides = array<i32>} : memref<8x128xf32, #tpu.memory_space<vmem>>, vector<8x128xf32>,
    } else {
    }
    return
  }
  func.func @transform_0(%arg0: i32, %arg1: i32, %arg2: memref<3xi32, #tpu.memory_space<smem>>, %arg3: memref<3xi32, #tpu.memory_space<smem>>) -> (i32, i32) {
    %c0_i32 = arith.constant 0 : i32
    return %arg0, %arg1 : i32, i32
  }
  func.func @transform_1(%arg0: i32, %arg1: i32, %arg2: memref<3xi32, #tpu.memory_space<smem>>, %arg3: memref<3xi32, #tpu.memory_space<smem>>) -> (i32, i32) {
    %c0_i32 = arith.constant 0 : i32
    %c0_i32_0 = arith.constant 0 : i32
    return %arg0, %c0_i32 : i32, i32
  }
}

</mosaic_0001>

<llo_original>
// kernel: tpu_custom_call.1
$region0: #{tpu_custom_call.1}
  #allocation0 [shape = 'u32[]', space=smem, size = 0x4, offset = 0x4, fixed_abs, tag = 'smem constant byte address 0x4 - core index']
  #allocation1 [shape = 'u32[144,128]{1,0:T(1,128)}', space=vmem, size = 0x12000, scoped, tag = 'internal scratch']
  #allocation2 [shape = 'f32[8,128]{1,0:T(8,128)}', space=vmem, size = 0x1000, scoped, tag = 'scratch operand']
  #allocation3 [shape = 'f32[8,128]{1,0:T(8,128)}', space=vmem, size = 0x1000, scoped, tag = 'scratch operand']
  #allocation4 [shape = 'f32[8,128]{1,0:T(8,128)}', space=vmem, size = 0x1000, scoped, tag = 'scratch operand']
  #allocation5 [shape = 's32[1]{0}', space=sflag, size = 0x4, scoped, tag = 'scoped memory for tpu_custom_call.1']
  #allocation6 [shape = 'u8[512]{0}', space=smem, size = 0x200, scoped, tag = 'prefetched SMEM operand 0']
  #allocation7 [shape = 'u8[512]{0}', space=smem, size = 0x200, scoped, tag = 'prefetched SMEM operand 1']
  %s0 = inlined_call_operand.hbm [shape: s32[3], index: 0, kind: input, shape index: {}]
  %s1 = inlined_call_operand.vmem [shape: s32[3], index: 1, kind: input, shape index: {}]
  %s2 = inlined_call_operand.hbm [shape: f32[8,384], index: 2, kind: input, shape index: {}]
  %s3 = inlined_call_operand.hbm [shape: f32[8,128], index: 3, kind: output, shape index: {}]
  %s4 = sld [smem:[#allocation0]]
  $region57: #{tpu_custom_call.1} parent=0
    _
  %s6 = ssub.s32 1, %s4
  %s7 = scalar_select 0, %s6, %s4
  %9 = dma.hbm_to_smem %s0, 16, [#allocation6], [#allocation5]
  %s10 = sshll.u32 %s1, 4
  %s11 = int_to_ptr.vmem [resolvable:$true] %s10
  %13 = dma.vmem_to_smem %s11, 16, [#allocation7], [#allocation5]
  %14 = dma.done [#allocation5], 32
  %15 = sfence
  $region1: #{tpu_custom_call.1} parent=0
    #allocation8 [shape = 'u8[8192]{0}', space=vmem, size = 0x2000, scoped, tag = 'input window, operand 2']
    #allocation9 [shape = 's32[2]{0}', space=sflag, size = 0x8, scoped, tag = 'scoped memory for tpu_custom_call.1']
    #allocation10 [shape = 's32[2]{0}', space=sflag, size = 0x8, scoped, tag = 'scoped memory for tpu_custom_call.1']
    #allocation11 [shape = 'u8[4096]{0}', space=vmem, size = 0x1000, scoped, tag = 'output window, operand 0, single buffered']
    %16 = vsyncpa [#allocation9], 0
    %s17 = scalar_lea.sflag [#allocation9], 1
    %18 = vsyncpa %s17, 0
    %19 = vsyncpa [#allocation10], 0
    loop: start=0, step=1, limit=5
    $region2: #{tpu_custom_call.1} parent=1 // loop_pre_header
      _
    $region3: #{tpu_custom_call.1} parent=1 // loop_header
      %s21 = sphi 0, %s25
      %p22 = scmp.ge.s32.totalorder %s21, 5
      %s28 = sphi 0, %s40
      %s29 = sphi 0, %s36
      %s30 = sphi 0, %s28
      %s31 = sphi 0, %s29
      %s32 = sphi 0, %s30
      %s33 = sphi 0, %s31
      %s45 = sphi 0, %s47
      %s48 = sphi 0, %s45
      %s49 = sphi 0, %s48
      %s65 = sphi 0, %s49
      %s71 = sphi 0, %s73
      %s74 = sphi 0, %s71
      %s75 = sphi 0, %s74
      %s91 = sphi 0, %s75
    $region4: #{tpu_custom_call.1} parent=1 // loop_header_branch
      %24 = sbr.rel (%p22) target = $region8
    $region5: #{tpu_custom_call.1} parent=1 // loop_body
      %s26 = ssub.s32 %s21, 1
      %s27 = ssub.s32 %s21, 2
      %s34 = sadd.s32 1, %s29
      %p35 = scmp.ge.s32.totalorder %s34, 3
      %s36 = scalar_select %p35, 0, %s34
      %s37 = sadd.s32 1, %s28
      %s38 = scalar_select %p35, %s37, %s28
      %p39 = scmp.ge.s32.totalorder %s38, 1
      %s40 = scalar_select %p39, 0, %s38
      %s41 = ssub.s32 %s28, %s40
      %s42 = ssub.s32 %s29, %s36
      %s43 = sor.u32 %s41, %s42
      %p44 = scmp.eq.s32.totalorder %s43, 0
      %s46 = sadd.s32 %s45, 1
      %s47 = scalar_select %p44, %s45, %s46
      %p50 = pneg %p44
      %p51 = scmp.eq.s32.totalorder %s21, 2
      %p52 = por %p50, %p51
      %p53 = scmp.ne.s32.totalorder %s45, %s48
      %p54 = scmp.eq.s32.totalorder %s21, 0
      %p55 = por %p53, %p54
      %p56 = scmp.ne.s32.totalorder %s45, %s48
      %p57 = scmp.eq.s32.totalorder %s26, 2
      %p58 = por %p56, %p57
      %p59 = scmp.ne.s32.totalorder %s48, %s49
      %p60 = scmp.eq.s32.totalorder %s26, 0
      %p61 = por %p59, %p60
      %p62 = scmp.ne.s32.totalorder %s48, %s49
      %p63 = scmp.eq.s32.totalorder %s27, 2
      %p64 = por %p62, %p63
      %p66 = scmp.ne.s32.totalorder %s49, %s65
      %p67 = scmp.eq.s32.totalorder %s27, 0
      %p68 = por %p66, %p67
      %s69 = ssub.s32 %s28, %s40
      %p70 = scmp.eq.s32.totalorder %s69, 0
      %s72 = sadd.s32 %s71, 1
      %s73 = scalar_select %p70, %s71, %s72
      %p76 = pneg %p70
      %p77 = scmp.eq.s32.totalorder %s21, 2
      %p78 = por %p76, %p77
      %p79 = scmp.ne.s32.totalorder %s71, %s74
      %p80 = scmp.eq.s32.totalorder %s21, 0
      %p81 = por %p79, %p80
      %p82 = scmp.ne.s32.totalorder %s71, %s74
      %p83 = scmp.eq.s32.totalorder %s26, 2
      %p84 = por %p82, %p83
      %p85 = scmp.ne.s32.totalorder %s74, %s75
      %p86 = scmp.eq.s32.totalorder %s26, 0
      %p87 = por %p85, %p86
      %p88 = scmp.ne.s32.totalorder %s74, %s75
      %p89 = scmp.eq.s32.totalorder %s27, 2
      %p90 = por %p88, %p89
      %p92 = scmp.ne.s32.totalorder %s75, %s91
      %p93 = scmp.eq.s32.totalorder %s27, 0
      %p94 = por %p92, %p93
      %p95 = scmp.le.s32.totalorder 1, %s21
      %p96 = scmp.lt.s32.totalorder %s21, 4
      %p97 = pnand %p95, %p96
      %p98 = pneg %p97
      // Predicated region
      $region9: #{tpu_custom_call.1} parent=5 // pred_check
        _
      $region10: #{tpu_custom_call.1} parent=5 // pred_check_branch
        %100 = sbr.rel (%p97) target = $region12
      $region11: #{tpu_custom_call.1} parent=5 // pred_region
        %s101 = ssub.s32 %s21, 1
      $region12: #{tpu_custom_call.1} parent=5 // pred_fallthru
        _
      %p102 = scmp.lt.s32.totalorder %s21, 3
      // Predicated region
      $region13: #{tpu_custom_call.1} parent=5 // pred_check
        %p103 = pneg %p102
      $region14: #{tpu_custom_call.1} parent=5 // pred_check_branch
        %105 = sbr.rel (%p103) target = $region16
      $region15: #{tpu_custom_call.1} parent=5 // pred_region
        // Predicated region
        $region17: #{tpu_custom_call.1} parent=15 // pred_check
          %p106 = pneg %p55
        $region18: #{tpu_custom_call.1} parent=15 // pred_check_branch
          %108 = sbr.rel (%p106) target = $region20
        $region19: #{tpu_custom_call.1} parent=15 // pred_region
          %s109 = sand.u32 %s45, 1
          %s110 = scalar_lea.sflag [#allocation9], %s109
          %s111 = sand.u32 %s45, 1
          %s112 = smul.addr %s111, 8
          %s113 = scalar_lea.vmem [#allocation8], %s112
          %s115 = ssub.s32 128, 128
          %116 = vsyncadd %s110, %s115
          %s117 = smul.addr %s28, 3
          %s118 = sadd.s32 %s29, %s117
          %s119 = smul.addr %s118, 128
          %s120 = scalar_lea.hbm %s2, %s119
          %s122 = sshll.u32 %s113, 4
          %s123 = int_to_ptr.vmem [resolvable:$true] %s122
          %125 = dma.hbm_to_vmem [thread:$0]  %s120, 128, %s123, %s110
        $region20: #{tpu_custom_call.1} parent=15 // pred_fallthru
          _
      $region16: #{tpu_custom_call.1} parent=5 // pred_fallthru
        _
      %p126 = scmp.le.s32.totalorder 1, %s21
      %p127 = scmp.lt.s32.totalorder %s21, 4
      %p128 = pnand %p126, %p127
      %p129 = pneg %p128
      // Predicated region
      $region21: #{tpu_custom_call.1} parent=5 // pred_check
        _
      $region22: #{tpu_custom_call.1} parent=5 // pred_check_branch
        %131 = sbr.rel (%p128) target = $region24
      $region23: #{tpu_custom_call.1} parent=5 // pred_region
        %s132 = ssub.s32 %s21, 1
        %s133 = sand.u32 %s48, 1
        %s134 = scalar_lea.sflag [#allocation9], %s133
        %s135 = sand.u32 %s48, 1
        %s136 = smul.addr %s135, 8
        %s137 = scalar_lea.vmem [#allocation8], %s136
        // Predicated region
        $region25: #{tpu_custom_call.1} parent=23 // pred_check
          %p138 = pneg %p61
        $region26: #{tpu_custom_call.1} parent=23 // pred_check_branch
          %140 = sbr.rel (%p138) target = $region28
        $region27: #{tpu_custom_call.1} parent=23 // pred_region
          %141 = dma.done %s134, 128
        $region28: #{tpu_custom_call.1} parent=23 // pred_fallthru
          _
        %s142 = sand.u32 %s48, 1
        %s143 = scalar_lea.sflag [#allocation9], %s142
        %s144 = sand.u32 %s48, 1
        %s145 = smul.addr %s144, 8
        %s146 = scalar_lea.vmem [#allocation8], %s145
        %p147 = pneg %p61
        %p148 = pneg %p58
        %p149 = pneg %p87
        %p150 = pneg %p84
        %p151 = scmp.eq.s32.totalorder %s31, 0
        // Predicated region
        $region29: #{tpu_custom_call.1} parent=23 // pred_check
          %p152 = pneg %p151
        $region30: #{tpu_custom_call.1} parent=23 // pred_check_branch
          %154 = sbr.rel (%p152) target = $region32
        $region31: #{tpu_custom_call.1} parent=23 // pred_region
          %155 = vst [vmem:[#allocation4] sm:$0xff] 0.0
        $region32: #{tpu_custom_call.1} parent=23 // pred_fallthru
          _
        %s156 = sld [smem:[#allocation6 + %s31]]
        %p157 = scmp.eq.s32.totalorder %s156, 1
        // Predicated region
        $region33: #{tpu_custom_call.1} parent=23 // pred_check
          %p158 = pneg %p157
        $region34: #{tpu_custom_call.1} parent=23 // pred_check_branch
          %160 = sbr.rel (%p158) target = $region36
        $region35: #{tpu_custom_call.1} parent=23 // pred_region
          %161 = vst [vmem:[#allocation2] sm:$0xff] -1e+30
          %162 = vst [vmem:[#allocation3] sm:$0xff] 0.0
        $region36: #{tpu_custom_call.1} parent=23 // pred_fallthru
          _
        %v163 = vld [vmem:[#allocation2] sm:$0xff]
        %v164 = vld [vmem:[%s137] sm:$0xff]
        %v165 = vmax.f32 %v163, %v164
        %v166 = vsub.f32 %v164, %v165
        %v167 = vmul.f32 %v166, 1.442695
        %v168 = vpow.pop %v167
        %v169 = vld [vmem:[#allocation3] sm:$0xff]
        %v170 = vsub.f32 %v163, %v165
        %v171 = vmul.f32 %v170, 1.442695
        %v172 = vpow.pop %v171
        %v173 = vmul.f32 %v169, %v172
        %v174 = vadd.f32 %v173, %v168
        %175 = vst [vmem:[#allocation3] sm:$0xff] %v174
        %176 = vst [vmem:[#allocation2] sm:$0xff] %v165
        %s177 = sld [smem:[#allocation7 + %s31]]
        %p178 = scmp.eq.s32.totalorder %s177, 1
        // Predicated region
        $region37: #{tpu_custom_call.1} parent=23 // pred_check
          %p179 = pneg %p178
        $region38: #{tpu_custom_call.1} parent=23 // pred_check_branch
          %181 = sbr.rel (%p179) target = $region40
        $region39: #{tpu_custom_call.1} parent=23 // pred_region
          %v182 = vld [vmem:[#allocation2] sm:$0xff]
          %183 = vmax.xlane.f32.xlu0 %v182
          %v184 = vpop.xlane.xlu0 %183
          %v185 = vld [vmem:[#allocation3] sm:$0xff]
          %v186 = vsub.f32 %v182, %v184
          %v187 = vmul.f32 %v186, 1.442695
          %v188 = vpow.pop %v187
          %v189 = vmul.f32 %v185, %v188
          %190 = vadd.xlane.f32.xlu0 %v189
          %v191 = vpop.xlane.xlu0 %190
          %v192 = vld [vmem:[#allocation4] sm:$0xff]
          %v193 = vlog2.pop %v191
          %v194 = vmul.f32 %v193, 0.6931472
          %v195 = vadd.f32 %v184, %v194
          %v196 = vadd.f32 %v192, %v195
          %197 = vst [vmem:[#allocation4] sm:$0xff] %v196
        $region40: #{tpu_custom_call.1} parent=23 // pred_fallthru
          _
        %p198 = scmp.eq.s32.totalorder %s31, 2
        // Predicated region
        $region41: #{tpu_custom_call.1} parent=23 // pred_check
          %p199 = pneg %p198
        $region42: #{tpu_custom_call.1} parent=23 // pred_check_branch
          %201 = sbr.rel (%p199) target = $region44
        $region43: #{tpu_custom_call.1} parent=23 // pred_region
          %v202 = vld [vmem:[#allocation4] sm:$0xff]
          %203 = vst [vmem:[#allocation11] sm:$0xff] %v202
        $region44: #{tpu_custom_call.1} parent=23 // pred_fallthru
          _
        // Predicated region
        $region45: #{tpu_custom_call.1} parent=23 // pred_check
          %p204 = pneg %p84
        $region46: #{tpu_custom_call.1} parent=23 // pred_check_branch
          %206 = sbr.rel (%p204) target = $region48
        $region47: #{tpu_custom_call.1} parent=23 // pred_region
          %s208 = ssub.s32 128, 128
          %209 = vsyncadd [#allocation10], %s208
          %s210 = smul.addr %s30, 128
          %s211 = scalar_lea.hbm %s3, %s210
          %s213 = sshll.u32 [#allocation11], 4
          %s214 = int_to_ptr.vmem [resolvable:$true] %s213
          %216 = dma.vmem_to_hbm [thread:$0]  %s214, 128, %s211, [#allocation10]
        $region48: #{tpu_custom_call.1} parent=23 // pred_fallthru
          _
        // Predicated region
        $region49: #{tpu_custom_call.1} parent=23 // pred_check
          %p217 = pneg %p84
        $region50: #{tpu_custom_call.1} parent=23 // pred_check_branch
          %219 = sbr.rel (%p217) target = $region52
        $region51: #{tpu_custom_call.1} parent=23 // pred_region
          %220 = dma.done [#allocation10], 128
        $region52: #{tpu_custom_call.1} parent=23 // pred_fallthru
          _
      $region24: #{tpu_custom_call.1} parent=5 // pred_fallthru
        _
      %p221 = scmp.le.s32.totalorder 2, %s21
      // Predicated region
      $region53: #{tpu_custom_call.1} parent=5 // pred_check
        %p222 = pneg %p221
      $region54: #{tpu_custom_call.1} parent=5 // pred_check_branch
        %224 = sbr.rel (%p222) target = $region56
      $region55: #{tpu_custom_call.1} parent=5 // pred_region
        %s225 = ssub.s32 %s21, 2
      $region56: #{tpu_custom_call.1} parent=5 // pred_fallthru
        _
    $region6: #{tpu_custom_call.1} parent=1 // loop_footer
      %s25 = sadd.s32 1, %s21
    $region7: #{tpu_custom_call.1} parent=1 // loop_footer_branch
      %20 = sbr.rel target = $region3
    $region8: #{tpu_custom_call.1} parent=1 // loop_exit
      _
    %226 = vsyncpa [#allocation9], 1
    %s227 = scalar_lea.sflag [#allocation9], 1
    %228 = vsyncpa %s227, 1
    %229 = vsyncpa [#allocation10], 1
    %s230 = scalar_lea.sflag [#allocation10], 1
    %231 = vsyncpa %s230, 1

</llo_original>
